<compile_context>
chip_gen: v6e
topology: v6e:2x2x1
jax: 0.10.0
libtpu: 0.0.40
codegen_flags: <defaults>
</compile_context>

<pallas_src>
import functools

import jax
import jax.numpy as jnp
from jax import lax
from jax.experimental import pallas as pl
from jax.experimental.pallas import tpu as pltpu


# ---------------------------------------------------------------------------
# Kernels
# ---------------------------------------------------------------------------

def _cosine_kernel(x1_ref, x2_ref, o_ref, *, eps):
    """Whole reduction axis resident: block (TB, C, TILE_N) -> (TB, 1, TILE_N)."""
    x1 = x1_ref[...].astype(jnp.float32)
    x2 = x2_ref[...].astype(jnp.float32)

    dot = jnp.sum(x1 * x2, axis=1, keepdims=True)
    s1 = jnp.sum(x1 * x1, axis=1, keepdims=True)
    s2 = jnp.sum(x2 * x2, axis=1, keepdims=True)

    # torch semantics: dot / (max(||x1||, eps) * max(||x2||, eps)).
    # max(sqrt(s), eps) == sqrt(max(s, eps^2)) -> rsqrt on the EUP (free slot).
    eps2 = eps * eps
    inv = lax.rsqrt(jnp.maximum(s1, eps2)) * lax.rsqrt(jnp.maximum(s2, eps2))
    o_ref[...] = (dot * inv).astype(o_ref.dtype)


def _cosine_csplit_kernel(x1_ref, x2_ref, o_ref, dot_ref, s1_ref, s2_ref, *,
                          eps, c_total, tile_c):
    """C split across an 'arbitrary' grid axis with f32 VMEM accumulators.

    Blocks: x (1, TILE_C, TILE_N); out (1, 1, TILE_N); scratches (1, TILE_N) f32.
    """
    k = pl.program_id(2)

    @pl.when(k == 0)
    def _():
        dot_ref[...] = jnp.zeros_like(dot_ref)
        s1_ref[...] = jnp.zeros_like(s1_ref)
        s2_ref[...] = jnp.zeros_like(s2_ref)

    x1 = x1_ref[...].astype(jnp.float32)
    x2 = x2_ref[...].astype(jnp.float32)

    if c_total % tile_c != 0:
        # Last C block is partial: padded sublanes hold undefined data -> mask them.
        valid = c_total - k * tile_c
        rows = lax.broadcasted_iota(jnp.int32, x1.shape, 1)
        keep = rows < valid
        x1 = jnp.where(keep, x1, 0.0)
        x2 = jnp.where(keep, x2, 0.0)

    dot_ref[...] += jnp.sum(x1 * x2, axis=1)
    s1_ref[...] += jnp.sum(x1 * x1, axis=1)
    s2_ref[...] += jnp.sum(x2 * x2, axis=1)

    @pl.when(k == pl.num_programs(2) - 1)
    def _():
        eps2 = eps * eps
        inv = (lax.rsqrt(jnp.maximum(s1_ref[...], eps2)) *
               lax.rsqrt(jnp.maximum(s2_ref[...], eps2)))
        res = dot_ref[...] * inv               # (1, TILE_N)
        o_ref[...] = res[:, None, :].astype(o_ref.dtype)


# ---------------------------------------------------------------------------
# Wrapper
# ---------------------------------------------------------------------------

def _round_up(v, m):
    return -(-v // m) * m


def _round_down(v, m):
    return (v // m) * m


def _vmem_budgets():
    """(block_budget_bytes, vmem_limit_bytes) derived per TPU generation."""
    try:
        cap = int(pltpu.get_tpu_info().vmem_capacity_bytes)
    except Exception:
        cap = 64 << 20  # conservative fallback: v7x per-TensorCore VMEM
    if cap >= (100 << 20):                 # v5e / v6e: 128 MiB physical VMEM
        return 40 << 20, 64 << 20
    # v7x: 64 MiB per TensorCore -> stay well inside it.
    return min(cap * 3 // 8, 22 << 20), min(cap * 3 // 4, 44 << 20)


def cosine_similarity_pallas(x1, x2, dim: int = 1, eps: float = 1e-8, *,
                             force_csplit: bool = False,
                             tile_n: int | None = None,
                             tile_c: int | None = None):
    """Cosine similarity reducing over `dim` (default 1)."""
    assert x1.shape == x2.shape, "broadcasting between x1/x2 not supported"
    ndim = x1.ndim
    dim = dim % ndim
    shape = x1.shape

    C = shape[dim]
    B = 1
    for s in shape[:dim]:
        B *= s
    N = 1
    for s in shape[dim + 1:]:
        N *= s
    out_shape_nd = shape[:dim] + shape[dim + 1:]

    # Contiguous reshape only — no HBM relayout / padding copies.
    x1_3d = x1.reshape(B, C, N)
    x2_3d = x2.reshape(B, C, N)

    itemsize = jnp.dtype(x1.dtype).itemsize
    budget, vmem_limit = _vmem_budgets()
    # Per block element: 2 inputs x 2 pipeline buffers (input dtype) + ~3 live f32 temps.
    bytes_per_elem = 4 * itemsize + 12
    max_block_elems = max(budget // bytes_per_elem, 1024)

    c_pad = _round_up(C, 8)
    n_pad_full = _round_up(N, 128)
    min_steps = 8  # enough grid iterations to feed both v7x TCs + double-buffering

    cost = pl.CostEstimate(
        flops=6 * B * C * N,
        transcendentals=2 * B * N,
        bytes_accessed=(2 * B * C * N + B * N) * itemsize,
    )

    tile_n_auto = _round_down(max_block_elems // c_pad, 128)
    use_csplit = force_csplit or (tile_n_auto < 512 and C > 256)

    if not use_csplit:
        tn = tile_n_auto if tile_n is None else int(tile_n)
        tb = 1
        if tn >= N:
            tn = N
            # Block still under-fills the budget: fold several batch rows per step.
            tb = max(1, min(B, max_block_elems // max(1, c_pad * n_pad_full)))
            if B // tb < min_steps:
                if B >= min_steps:
                    tb = max(1, B // min_steps)
                elif N >= min_steps * 256:
                    # Few batches: split N instead so the grid has enough steps.
                    want = max(1, min_steps // max(B, 1))
                    tn = max(256, _round_down(max(N // want, 1), 128))
                    tb = 1
        grid = (-(-B // tb), -(-N // tn))
        kernel = functools.partial(_cosine_kernel, eps=float(eps))
        out = pl.pallas_call(
            kernel,
            out_shape=jax.ShapeDtypeStruct((B, 1, N), x1.dtype),
            grid_spec=pltpu.PrefetchScalarGridSpec(
                num_scalar_prefetch=0,
                grid=grid,
                in_specs=[
                    pl.BlockSpec((tb, C, tn), lambda b, i: (b, 0, i)),
                    pl.BlockSpec((tb, C, tn), lambda b, i: (b, 0, i)),
                ],
                out_specs=pl.BlockSpec((tb, 1, tn), lambda b, i: (b, 0, i)),
            ),
            compiler_params=pltpu.CompilerParams(
                dimension_semantics=("parallel", "parallel"),
                vmem_limit_bytes=vmem_limit),
            cost_estimate=cost,
        )(x1_3d, x2_3d)
    else:
        # Large C: keep lanes wide, stream C across an 'arbitrary' axis with accumulators.
        tn = int(tile_n) if tile_n is not None else (N if N <= 2048 else 2048)
        if tn >= N:
            tn = N
        tn_pad = _round_up(tn, 128)
        tc = int(tile_c) if tile_c is not None else max(
            8, _round_down(max_block_elems // tn_pad, 8))
        if tc >= C:
            tc = C
        grid = (B, -(-N // tn), -(-C // tc))
        kernel = functools.partial(_cosine_csplit_kernel, eps=float(eps),
                                   c_total=C, tile_c=tc)
        out = pl.pallas_call(
            kernel,
            out_shape=jax.ShapeDtypeStruct((B, 1, N), x1.dtype),
            grid_spec=pltpu.PrefetchScalarGridSpec(
                num_scalar_prefetch=0,
                grid=grid,
                in_specs=[
                    pl.BlockSpec((1, tc, tn), lambda b, i, k: (b, k, i)),
                    pl.BlockSpec((1, tc, tn), lambda b, i, k: (b, k, i)),
                ],
                out_specs=pl.BlockSpec((1, 1, tn), lambda b, i, k: (b, 0, i)),
                scratch_shapes=[
                    pltpu.VMEM((1, tn), jnp.float32),
                    pltpu.VMEM((1, tn), jnp.float32),
                    pltpu.VMEM((1, tn), jnp.float32),
                ],
            ),
            compiler_params=pltpu.CompilerParams(
                dimension_semantics=("parallel", "parallel", "arbitrary"),
                vmem_limit_bytes=vmem_limit),
            cost_estimate=cost,
        )(x1_3d, x2_3d)

    return out.reshape(out_shape_nd)


def cosine_similarity_ref(x1, x2, dim: int = 1, eps: float = 1e-8):
    x1f = x1.astype(jnp.float32)
    x2f = x2.astype(jnp.float32)
    dot = jnp.sum(x1f * x2f, axis=dim)
    n1 = jnp.sqrt(jnp.sum(x1f * x1f, axis=dim))
    n2 = jnp.sqrt(jnp.sum(x2f * x2f, axis=dim))
    return (dot / (jnp.maximum(n1, eps) * jnp.maximum(n2, eps))).astype(x1.dtype)


if __name__ == "__main__":
    key = jax.random.PRNGKey(0)
    k1, k2, k3, k4 = jax.random.split(key, 4)

    # --- standard path: NCHW, reduce over channels ---
    B, C, H, W = 2, 4, 16, 16
    x1 = jax.random.normal(k1, (B, C, H, W), dtype=jnp.float32)
    x2 = jax.random.normal(k2, (B, C, H, W), dtype=jnp.float32)
    out = jax.block_until_ready(cosine_similarity_pallas(x1, x2, dim=1, eps=1e-8))
    ref = cosine_similarity_ref(x1, x2, dim=1, eps=1e-8)
    assert out.shape == (B, H, W), out.shape
    assert jnp.allclose(out, ref, atol=1e-5, rtol=1e-5), "standard path mismatch"

    # --- C-split path (forced at a small shape; also exercises partial-C masking) ---
    Cc = 28
    y1 = jax.random.normal(k3, (B, Cc, H, W), dtype=jnp.float32)
    y2 = jax.random.normal(k4, (B, Cc, H, W), dtype=jnp.float32)
    out2 = jax.block_until_ready(
        cosine_similarity_pallas(y1, y2, dim=1, eps=1e-8, force_csplit=True, tile_c=8))
    ref2 = cosine_similarity_ref(y1, y2, dim=1, eps=1e-8)
    assert out2.shape == (B, H, W), out2.shape
    assert jnp.allclose(out2, ref2, atol=1e-5, rtol=1e-5), "C-split path mismatch"

    print("KERNEL_OK")
</pallas_src>

<mosaic_0001>
module attributes {stable_mosaic.version = 11 : i64} {
  func.func @_cosine_kernel(%arg0: i32, %arg1: i32, %arg2: memref<2x4x256xf32, #tpu.memory_space<vmem>>, %arg3: memref<2x4x256xf32, #tpu.memory_space<vmem>>, %arg4: memref<2x1x256xf32, #tpu.memory_space<vmem>>) attributes {dimension_semantics = [#tpu.dimension_semantics<parallel>, #tpu.dimension_semantics<parallel>], iteration_bounds = array<i64: 1, 1>, scalar_prefetch = 0 : i64, scratch_operands = 0 : i64, tpu.core_type = #tpu.core_type<tc>, window_params = [{transform_indices = @transform_0, window_bounds = array<i64: 2, 4, 256>}, {transform_indices = @transform_1, window_bounds = array<i64: 2, 4, 256>}, {transform_indices = @transform_2, window_bounds = array<i64: 2, 1, 256>}]} {
    %c0 = arith.constant 0 : index
    %c0_0 = arith.constant 0 : index
    %c0_1 = arith.constant 0 : index
    %0 = vector.load %arg2[%c0, %c0_0, %c0_1] : memref<2x4x256xf32, #tpu.memory_space<vmem>>, vector<2x4x256xf32>
    %c0_2 = arith.constant 0 : index
    %c0_3 = arith.constant 0 : index
    %c0_4 = arith.constant 0 : index
    %1 = vector.load %arg3[%c0_2, %c0_3, %c0_4] : memref<2x4x256xf32, #tpu.memory_space<vmem>>, vector<2x4x256xf32>
    %2 = arith.mulf %0, %1 : vector<2x4x256xf32>
    %cst = arith.constant dense<0.000000e+00> : vector<2x256xf32>
    %3 = vector.multi_reduction <add>, %2, %cst [1] : vector<2x4x256xf32> to vector<2x256xf32>
    %4 = vector.shape_cast %3 : vector<2x256xf32> to vector<2x1x256xf32>
    %5 = arith.mulf %0, %0 : vector<2x4x256xf32>
    %cst_5 = arith.constant dense<0.000000e+00> : vector<2x256xf32>
    %6 = vector.multi_reduction <add>, %5, %cst_5 [1] : vector<2x4x256xf32> to vector<2x256xf32>
    %7 = vector.shape_cast %6 : vector<2x256xf32> to vector<2x1x256xf32>
    %8 = arith.mulf %1, %1 : vector<2x4x256xf32>
    %cst_6 = arith.constant dense<0.000000e+00> : vector<2x256xf32>
    %9 = vector.multi_reduction <add>, %8, %cst_6 [1] : vector<2x4x256xf32> to vector<2x256xf32>
    %10 = vector.shape_cast %9 : vector<2x256xf32> to vector<2x1x256xf32>
    %cst_7 = arith.constant 1.000000e-16 : f32
    %11 = vector.broadcast %cst_7 : f32 to vector<2x1x256xf32>
    %12 = arith.maximumf %7, %11 : vector<2x1x256xf32>
    %13 = math.rsqrt %12 : vector<2x1x256xf32>
    %cst_8 = arith.constant 1.000000e-16 : f32
    %14 = vector.broadcast %cst_8 : f32 to vector<2x1x256xf32>
    %15 = arith.maximumf %10, %14 : vector<2x1x256xf32>
    %16 = math.rsqrt %15 : vector<2x1x256xf32>
    %17 = arith.mulf %13, %16 : vector<2x1x256xf32>
    %18 = arith.mulf %4, %17 : vector<2x1x256xf32>
    %c0_9 = arith.constant 0 : index
    %c0_10 = arith.constant 0 : index
    %c0_11 = arith.constant 0 : index
    %19 = vector.load %arg4[%c0_9, %c0_10, %c0_11] : memref<2x1x256xf32, #tpu.memory_space<vmem>>, vector<2x1x256xf32>
    tpu.vector_store %arg4[%c0_9, %c0_10, %c0_11], %18 {strides = array<i32>} : memref<2x1x256xf32, #tpu.memory_space<vmem>>, vector<2x1x256xf32>,
    return
  }
  func.func @transform_0(%arg0: i32, %arg1: i32) -> (i32, i32, i32) {
    %c0_i32 = arith.constant 0 : i32
    %c0_i32_0 = arith.constant 0 : i32
    return %arg0, %c0_i32, %arg1 : i32, i32, i32
  }
  func.func @transform_1(%arg0: i32, %arg1: i32) -> (i32, i32, i32) {
    %c0_i32 = arith.constant 0 : i32
    %c0_i32_0 = arith.constant 0 : i32
    return %arg0, %c0_i32, %arg1 : i32, i32, i32
  }
  func.func @transform_2(%arg0: i32, %arg1: i32) -> (i32, i32, i32) {
    %c0_i32 = arith.constant 0 : i32
    %c0_i32_0 = arith.constant 0 : i32
    return %arg0, %c0_i32, %arg1 : i32, i32, i32
  }
}

</mosaic_0001>

<llo_original>
// kernel: tpu_custom_call.1
$region0: #{tpu_custom_call.1}
  #allocation0 [shape = 'u32[]', space=smem, size = 0x4, offset = 0x4, fixed_abs, tag = 'smem constant byte address 0x4 - core index']
  #allocation1 [shape = 'u32[144,128]{1,0:T(1,128)}', space=vmem, size = 0x12000, scoped, tag = 'internal scratch']
  %s0 = inlined_call_operand.hbm [shape: f32[2,4,256], index: 0, kind: input, shape index: {}]
  %s1 = inlined_call_operand.hbm [shape: f32[2,4,256], index: 1, kind: input, shape index: {}]
  %s2 = inlined_call_operand.hbm [shape: f32[2,1,256], index: 2, kind: output, shape index: {}]
  %s3 = sld [smem:[#allocation0]]
  $region26: #{tpu_custom_call.1} parent=0
    _
  %s5 = ssub.s32 1, %s3
  %s6 = scalar_select 0, %s5, %s3
  $region1: #{tpu_custom_call.1} parent=0
    #allocation2 [shape = 'u8[8192]{0}', space=vmem, size = 0x2000, scoped, tag = 'input window, operand 0, single buffered']
    #allocation3 [shape = 's32[1]{0}', space=sflag, size = 0x4, scoped, tag = 'scoped memory for tpu_custom_call.1']
    #allocation4 [shape = 's32[1]{0}', space=sflag, size = 0x4, scoped, tag = 'scoped memory for tpu_custom_call.1']
    #allocation5 [shape = 'u8[8192]{0}', space=vmem, size = 0x2000, scoped, tag = 'input window, operand 1, single buffered']
    #allocation6 [shape = 's32[1]{0}', space=sflag, size = 0x4, scoped, tag = 'scoped memory for tpu_custom_call.1']
    #allocation7 [shape = 'u8[2048]{0}', space=vmem, size = 0x800, scoped, tag = 'output window, operand 0, single buffered']
    %7 = vsyncpa [#allocation3], 0
    %8 = vsyncpa [#allocation6], 0
    %9 = vsyncpa [#allocation4], 0
    // Predicated region
    $region2: #{tpu_custom_call.1} parent=1 // pred_check
      _
    $region3: #{tpu_custom_call.1} parent=1 // pred_check_branch
      %11 = sbr.rel (0) target = $region5
    $region4: #{tpu_custom_call.1} parent=1 // pred_region
      %s13 = ssub.s32 256, 256
      %14 = vsyncadd [#allocation3], %s13
      %s15 = sshll.u32 [#allocation2], 4
      %s16 = int_to_ptr.vmem [resolvable:$true] %s15
      %21 = dma.hbm_to_vmem [thread:$0]  %s0, 256, %s16, [#allocation3], 128, 128, 8
    $region5: #{tpu_custom_call.1} parent=1 // pred_fallthru
      _
    // Predicated region
    $region6: #{tpu_custom_call.1} parent=1 // pred_check
      _
    $region7: #{tpu_custom_call.1} parent=1 // pred_check_branch
      %23 = sbr.rel (0) target = $region9
    $region8: #{tpu_custom_call.1} parent=1 // pred_region
      %s25 = ssub.s32 256, 256
      %26 = vsyncadd [#allocation6], %s25
      %s27 = sshll.u32 [#allocation5], 4
      %s28 = int_to_ptr.vmem [resolvable:$true] %s27
      %33 = dma.hbm_to_vmem [thread:$0]  %s1, 256, %s28, [#allocation6], 128, 128, 8
    $region9: #{tpu_custom_call.1} parent=1 // pred_fallthru
      _
    // Predicated region
    $region10: #{tpu_custom_call.1} parent=1 // pred_check
      _
    $region11: #{tpu_custom_call.1} parent=1 // pred_check_branch
      %35 = sbr.rel (0) target = $region13
    $region12: #{tpu_custom_call.1} parent=1 // pred_region
      %36 = dma.done [#allocation3], 256
    $region13: #{tpu_custom_call.1} parent=1 // pred_fallthru
      _
    // Predicated region
    $region14: #{tpu_custom_call.1} parent=1 // pred_check
      _
    $region15: #{tpu_custom_call.1} parent=1 // pred_check_branch
      %38 = sbr.rel (0) target = $region17
    $region16: #{tpu_custom_call.1} parent=1 // pred_region
      %39 = dma.done [#allocation6], 256
    $region17: #{tpu_custom_call.1} parent=1 // pred_fallthru
      _
    %v40 = vld [vmem:[#allocation2] sm:$0xff]
    %v41 = vld [vmem:[#allocation2 + $0x8] sm:$0xff]
    %v42 = vld [vmem:[#allocation5] sm:$0xff]
    %v43 = vld [vmem:[#allocation5 + $0x8] sm:$0xff]
    %v44 = vmul.f32 %v40, %v42
    %v45 = vmul.f32 %v41, %v43
    %v48 = vcombine.high %v44, %v44
    %v49 = vcombine.high %v45, %v45
    %vm52 = vcmask 1043456
    %v53 = vsel %vm52, %v44, 0.0
    %v54 = vrot.slane %v53, 4
    %v55 = vadd.f32 %v53, %v54
    %v56 = vrot.slane %v55, 2
    %v57 = vadd.f32 %v55, %v56
    %v58 = vrot.slane %v57, 1
    %v59 = vadd.f32 %v57, %v58
    %v60 = vsel %vm52, %v48, 0.0
    %v61 = vrot.slane %v60, 4
    %v62 = vadd.f32 %v60, %v61
    %v63 = vrot.slane %v62, 2
    %v64 = vadd.f32 %v62, %v63
    %v65 = vrot.slane %v64, 1
    %v66 = vadd.f32 %v64, %v65
    %v67 = vsel %vm52, %v45, 0.0
    %v68 = vrot.slane %v67, 4
    %v69 = vadd.f32 %v67, %v68
    %v70 = vrot.slane %v69, 2
    %v71 = vadd.f32 %v69, %v70
    %v72 = vrot.slane %v71, 1
    %v73 = vadd.f32 %v71, %v72
    %v74 = vsel %vm52, %v49, 0.0
    %v75 = vrot.slane %v74, 4
    %v76 = vadd.f32 %v74, %v75
    %v77 = vrot.slane %v76, 2
    %v78 = vadd.f32 %v76, %v77
    %v79 = vrot.slane %v78, 1
    %v80 = vadd.f32 %v78, %v79
    %v81 = vmul.f32 %v40, %v40
    %v82 = vmul.f32 %v41, %v41
    %v85 = vcombine.high %v81, %v81
    %v86 = vcombine.high %v82, %v82
    %v89 = vsel %vm52, %v81, 0.0
    %v90 = vrot.slane %v89, 4
    %v91 = vadd.f32 %v89, %v90
    %v92 = vrot.slane %v91, 2
    %v93 = vadd.f32 %v91, %v92
    %v94 = vrot.slane %v93, 1
    %v95 = vadd.f32 %v93, %v94
    %v96 = vsel %vm52, %v85, 0.0
    %v97 = vrot.slane %v96, 4
    %v98 = vadd.f32 %v96, %v97
    %v99 = vrot.slane %v98, 2
    %v100 = vadd.f32 %v98, %v99
    %v101 = vrot.slane %v100, 1
    %v102 = vadd.f32 %v100, %v101
    %v103 = vsel %vm52, %v82, 0.0
    %v104 = vrot.slane %v103, 4
    %v105 = vadd.f32 %v103, %v104
    %v106 = vrot.slane %v105, 2
    %v107 = vadd.f32 %v105, %v106
    %v108 = vrot.slane %v107, 1
    %v109 = vadd.f32 %v107, %v108
    %v110 = vsel %vm52, %v86, 0.0
    %v111 = vrot.slane %v110, 4
    %v112 = vadd.f32 %v110, %v111
    %v113 = vrot.slane %v112, 2
    %v114 = vadd.f32 %v112, %v113
    %v115 = vrot.slane %v114, 1
    %v116 = vadd.f32 %v114, %v115
    %v117 = vmul.f32 %v42, %v42
    %v118 = vmul.f32 %v43, %v43
    %v121 = vcombine.high %v117, %v117
    %v122 = vcombine.high %v118, %v118
    %v125 = vsel %vm52, %v117, 0.0
    %v126 = vrot.slane %v125, 4
    %v127 = vadd.f32 %v125, %v126
    %v128 = vrot.slane %v127, 2
    %v129 = vadd.f32 %v127, %v128
    %v130 = vrot.slane %v129, 1
    %v131 = vadd.f32 %v129, %v130
    %v132 = vsel %vm52, %v121, 0.0
    %v133 = vrot.slane %v132, 4
    %v134 = vadd.f32 %v132, %v133
    %v135 = vrot.slane %v134, 2
    %v136 = vadd.f32 %v134, %v135
    %v137 = vrot.slane %v136, 1
    %v138 = vadd.f32 %v136, %v137
    %v139 = vsel %vm52, %v118, 0.0
    %v140 = vrot.slane %v139, 4
    %v141 = vadd.f32 %v139, %v140
    %v142 = vrot.slane %v141, 2
    %v143 = vadd.f32 %v141, %v142
    %v144 = vrot.slane %v143, 1
    %v145 = vadd.f32 %v143, %v144
    %v146 = vsel %vm52, %v122, 0.0
    %v147 = vrot.slane %v146, 4
    %v148 = vadd.f32 %v146, %v147
    %v149 = vrot.slane %v148, 2
    %v150 = vadd.f32 %v148, %v149
    %v151 = vrot.slane %v150, 1
    %v152 = vadd.f32 %v150, %v151
    %v153 = vmax.f32 %v95, 1e-16
    %v154 = vmax.f32 %v102, 1e-16
    %v155 = vmax.f32 %v109, 1e-16
    %v156 = vmax.f32 %v116, 1e-16
    %v157 = vrsqrt.pop %v153
    %v158 = vrsqrt.pop %v154
    %v159 = vrsqrt.pop %v155
    %v160 = vrsqrt.pop %v156
    %v161 = vmax.f32 %v131, 1e-16
    %v162 = vmax.f32 %v138, 1e-16
    %v163 = vmax.f32 %v145, 1e-16
    %v164 = vmax.f32 %v152, 1e-16
    %v165 = vrsqrt.pop %v161
    %v166 = vrsqrt.pop %v162
    %v167 = vrsqrt.pop %v163
    %v168 = vrsqrt.pop %v164
    %v169 = vmul.f32 %v157, %v165
    %v170 = vmul.f32 %v158, %v166
    %v171 = vmul.f32 %v159, %v167
    %v172 = vmul.f32 %v160, %v168
    %v173 = vmul.f32 %v59, %v169
    %v174 = vmul.f32 %v66, %v170
    %v175 = vmul.f32 %v73, %v171
    %v176 = vmul.f32 %v80, %v172
    %v181 = vcombine.low %v173, %v174
    %v183 = vunpack.c.l.s4 1966171168
    %v184 = vunpack.c.0.s8 %v183
    %v185 = vlaneseq
    %v186 = vshrl.u32 %v185, 7
    %v187 = vsub.s32 %v184, %v186
    %v188 = vrot.slane %v181, %v187
    %v190 = vunpack.c.l.s4 1966171168
    %v191 = vunpack.c.0.s8 %v190
    %v192 = vlaneseq
    %v193 = vshrl.u32 %v192, 7
    %v194 = vsub.s32 %v191, %v193
    %v195 = vrot.slane %v188, %v194
    %v196 = vcombine.low %v175, %v176
    %v198 = vunpack.c.l.s4 1966171168
    %v199 = vunpack.c.0.s8 %v198
    %v200 = vlaneseq
    %v201 = vshrl.u32 %v200, 7
    %v202 = vsub.s32 %v199, %v201
    %v203 = vrot.slane %v196, %v202
    %v205 = vunpack.c.l.s4 1966171168
    %v206 = vunpack.c.0.s8 %v205
    %v207 = vlaneseq
    %v208 = vshrl.u32 %v207, 7
    %v209 = vsub.s32 %v206, %v208
    %v210 = vrot.slane %v203, %v209
    %v213 = vlaneseq
    %vm214 = vcmp.ge.s32.totalorder %v213, 0
    %vm215 = vcmp.lt.s32.totalorder %v213, 256
    %vm216 = vmand %vm214, %vm215
    %217 = vst.msk [vmem:[#allocation7] sm:$0x3] %vm216, %v195
    %218 = vst.msk [vmem:[#allocation7 + $0x2] sm:$0x3] %vm216, %v210
    // Predicated region
    $region18: #{tpu_custom_call.1} parent=1 // pred_check
      _
    $region19: #{tpu_custom_call.1} parent=1 // pred_check_branch
      %220 = sbr.rel (0) target = $region21
    $region20: #{tpu_custom_call.1} parent=1 // pred_region
      %s222 = ssub.s32 64, 64
      %223 = vsyncadd [#allocation4], %s222
      %s224 = sshll.u32 [#allocation7], 4
      %s225 = int_to_ptr.vmem [resolvable:$true] %s224
      %230 = dma.vmem_to_hbm [thread:$0]  %s225, 64, %s2, [#allocation4], 32, 32, 2
    $region21: #{tpu_custom_call.1} parent=1 // pred_fallthru
      _
    // Predicated region
    $region22: #{tpu_custom_call.1} parent=1 // pred_check
      _
    $region23: #{tpu_custom_call.1} parent=1 // pred_check_branch
      %232 = sbr.rel (0) target = $region25
    $region24: #{tpu_custom_call.1} parent=1 // pred_region
      %233 = dma.done [#allocation4], 64
    $region25: #{tpu_custom_call.1} parent=1 // pred_fallthru
      _
    %234 = vsyncpa [#allocation3], 1
    %235 = vsyncpa [#allocation6], 1
    %236 = vsyncpa [#allocation4], 1

</llo_original>
